<compile_context>
chip_gen: v6e
topology: v6e:2x2x1
jax: 0.10.0
libtpu: 0.0.40
codegen_flags: <defaults>
</compile_context>

<pallas_src>
import functools

import jax
import jax.numpy as jnp
import numpy as np
from jax.experimental import pallas as pl
from jax.experimental.pallas import tpu as pltpu

KSIZE = 7
PAD = (KSIZE - 1) // 2

_ROLL_LIKE_JNP = None


def _roll_matches_jnp_roll():
    """Detect pltpu.roll's direction convention with a 1-vreg probe kernel.

    The conv taps rely on roll(x, s)[i] == x[(i - s) % N] (jnp.roll
    convention).  Probing once keeps the tap shifts correct regardless of the
    convention of the installed jax/Mosaic version.
    """
    global _ROLL_LIKE_JNP
    if _ROLL_LIKE_JNP is None:
        def probe(x_ref, o_ref):
            o_ref[...] = pltpu.roll(x_ref[...], 1, axis=1)

        x = jnp.tile(jnp.arange(128, dtype=jnp.float32)[None, :], (8, 1))
        y = pl.pallas_call(
            probe, out_shape=jax.ShapeDtypeStruct((8, 128), jnp.float32))(x)
        y = np.asarray(jax.block_until_ready(y))
        # jnp.roll convention: y[:, 1] == x[:, 0] == 0
        _ROLL_LIKE_JNP = bool(abs(float(y[0, 1])) < 0.5)
    return _ROLL_LIKE_JNP


def spatial_attn_kernel(w_ref, b_ref, pos_ref, x_ref, o_ref, *,
                        H, W, Bt, roll_like_jnp):
    """One batch tile.

    w_ref   : SMEM f32[98]       conv weight, flattened [in_ch, kh, kw]
    b_ref   : SMEM f32[1]        conv bias
    pos_ref : VMEM i32[2, H*W]   row / col index of every flat pixel
    x_ref   : VMEM [Bt, C, H*W]  lane-dense input block
    o_ref   : VMEM [Bt, C, H*W]  lane-dense output block
    """
    HW = H * W
    x_in = x_ref[...]                                    # (Bt, C, HW)

    # Channel reductions, directly in the lane-dense layout.  Mean accumulates
    # in f32, max stays in the native dtype (only the (Bt, HW) result is cast).
    # TODO(synk): chunk the sum over C for bf16/fp8 inputs to avoid the f32
    # upcast of the full block that dtype=float32 implies.
    c = x_in.shape[1]
    avg = jnp.sum(x_in, axis=1, dtype=jnp.float32) * (1.0 / c)   # (Bt, HW) f32
    mx = jnp.max(x_in, axis=1).astype(jnp.float32)               # (Bt, HW) f32

    rowv = pos_ref[0:1, :]                               # (1, HW) i32
    colv = pos_ref[1:2, :]                               # (1, HW) i32

    # 7x7 conv over the two planes, fully unrolled and fully lane-dense.
    # Each tap: combine the two planes with its scalar weights (VALU), shift
    # along the flat lane axis with pltpu.roll (XLU), and mask positions whose
    # source pixel falls outside the image (zero padding).  Two accumulator
    # chains keep the adds independent.
    accs = [jnp.full((Bt, HW), b_ref[0], jnp.float32),
            jnp.zeros((Bt, HW), jnp.float32)]
    t = 0
    for ki in range(KSIZE):
        dr = ki - PAD
        for kj in range(KSIZE):
            dc = kj - PAD
            w_avg = w_ref[ki * KSIZE + kj]
            w_max = w_ref[KSIZE * KSIZE + ki * KSIZE + kj]
            comb = w_avg * avg + w_max * mx              # (Bt, HW) f32
            s = dr * W + dc                              # flat source offset
            if s != 0:
                shift = (-s) % HW if roll_like_jnp else s % HW
                comb = pltpu.roll(comb, shift, axis=1)
            conds = []
            if dr > 0:
                conds.append(rowv < (H - dr))
            elif dr < 0:
                conds.append(rowv >= (-dr))
            if dc > 0:
                conds.append(colv < (W - dc))
            elif dc < 0:
                conds.append(colv >= (-dc))
            if conds:
                m = conds[0]
                for extra in conds[1:]:
                    m = m & extra
                comb = jnp.where(m, comb, 0.0)
            accs[t % 2] = accs[t % 2] + comb
            t += 1

    mask = jax.nn.sigmoid(accs[0] + accs[1])             # (Bt, HW) f32

    # Lane-dense rescale + store: (C, HW) * (1, HW) sublane broadcast per
    # batch element of the tile.  (Multiply is done in the input dtype; exact
    # for f32 inputs, tiny deviation for bf16 only.)
    for b in range(Bt):
        xb = x_in[b]                                     # (C, HW)
        mb = mask[b:b + 1, :].astype(xb.dtype)           # (1, HW)
        o_ref[b] = (xb * mb).astype(o_ref.dtype)


def _pick_batch_tile(B, per_batch_bytes, target_bytes=4 << 20, cap=8):
    """Largest divisor of B (<= cap) whose block stays around target_bytes."""
    best = 1
    for d in range(1, min(B, cap) + 1):
        if B % d == 0 and d * per_batch_bytes <= max(target_bytes, per_batch_bytes):
            best = d
    return best


def spatial_attention(x, weight, bias):
    """x: (B, C, H, W); weight: (1, 2, 7, 7); bias: (1,)."""
    B, C, H, W = x.shape
    HW = H * W
    x_flat = x.reshape(B, C, HW)                         # free reshape, lane-dense
    w_flat = weight.reshape(-1).astype(jnp.float32)      # (98,) [in_ch, kh, kw]
    b_flat = bias.reshape(-1).astype(jnp.float32)        # (1,)

    # Row / col index of every flat pixel: used for the conv's zero-padding
    # border masks (avoids any in-kernel integer div/mod).
    rows = jnp.repeat(jnp.arange(H, dtype=jnp.int32), W)
    cols = jnp.tile(jnp.arange(W, dtype=jnp.int32), H)
    pos = jnp.stack([rows, cols], axis=0)                # (2, HW) i32

    itemsize = x.dtype.itemsize
    per_batch_bytes = C * HW * itemsize
    Bt = _pick_batch_tile(B, per_batch_bytes)
    grid = (B // Bt,)
    # TODO(synk): for single-batch blocks exceeding ~1/4 of VMEM (e.g. C=256 @
    # 112x112 f32 on v7x) add an HW-tile grid axis with a 3*W halo.
    # TODO(synk): when HW < 128, pack several batch elements along the lane
    # axis so the dominant rescale/store runs with full 128-lane vectors.

    # VMEM budget: double-buffered in/out blocks + pos planes + the in-kernel
    # block copy and a handful of f32 planes/accumulators + slack.
    block_bytes = Bt * per_batch_bytes
    plane_bytes = Bt * HW * 4
    need = (2 * 2 * block_bytes + 2 * 2 * HW * 4
            + block_bytes + 10 * plane_bytes + (2 << 20))
    try:
        phys = int(pltpu.get_tpu_info().vmem_capacity_bytes)
    except Exception:
        phys = 64 << 20
    # Generation-aware ceiling: use v5e/v6e's 128 MiB (cap ~100 MiB), keep
    # >=12 MiB headroom on v7x's 64 MiB.
    ceiling = max(min(phys - (12 << 20), 100 << 20), 16 << 20)
    vmem_limit = int(min(max(need, 16 << 20), ceiling))

    cost = pl.CostEstimate(
        flops=int(B * (2 * 2 * KSIZE * KSIZE * HW + 4 * C * HW)),
        transcendentals=int(B * HW),
        bytes_accessed=int(2 * B * C * HW * itemsize),
    )

    kernel = functools.partial(
        spatial_attn_kernel, H=H, W=W, Bt=Bt,
        roll_like_jnp=_roll_matches_jnp_roll())

    out_flat = pl.pallas_call(
        kernel,
        out_shape=jax.ShapeDtypeStruct((B, C, HW), x.dtype),
        grid_spec=pltpu.PrefetchScalarGridSpec(
            num_scalar_prefetch=0,
            grid=grid,
            in_specs=[
                pl.BlockSpec(memory_space=pltpu.MemorySpace.SMEM),  # conv weight
                pl.BlockSpec(memory_space=pltpu.MemorySpace.SMEM),  # conv bias
                pl.BlockSpec((2, HW), lambda i: (0, 0)),            # row/col planes
                pl.BlockSpec((Bt, C, HW), lambda i: (i, 0, 0)),     # x block
            ],
            out_specs=pl.BlockSpec((Bt, C, HW), lambda i: (i, 0, 0)),
        ),
        compiler_params=pltpu.CompilerParams(
            dimension_semantics=("parallel",),
            vmem_limit_bytes=vmem_limit),
        cost_estimate=cost,
    )(w_flat, b_flat, pos, x_flat)
    return out_flat.reshape(B, C, H, W)


def reference_forward(x, weight, bias):
    """Pure-JAX reference matching the PyTorch module."""
    avg_mask = jnp.mean(x, axis=1, keepdims=True)
    max_mask = jnp.max(x, axis=1, keepdims=True)
    mask = jnp.concatenate([avg_mask, max_mask], axis=1)      # (B, 2, H, W)
    conv = jax.lax.conv_general_dilated(
        mask, weight, window_strides=(1, 1), padding="SAME",
        dimension_numbers=("NCHW", "OIHW", "NCHW"))
    mask = jax.nn.sigmoid(conv + bias.reshape(1, -1, 1, 1))
    return x * mask


if __name__ == "__main__":
    B, C, H, W = 2, 4, 16, 16
    key = jax.random.PRNGKey(0)
    kx, kw, kb = jax.random.split(key, 3)

    x = jax.random.normal(kx, (B, C, H, W), dtype=jnp.float32)
    # Deterministic synthetic parameters (Conv2d(2, 1, 7, padding=3) shapes).
    weight = 0.1 * jax.random.normal(kw, (1, 2, KSIZE, KSIZE), dtype=jnp.float32)
    bias = 0.1 * jax.random.normal(kb, (1,), dtype=jnp.float32)

    y = jax.block_until_ready(spatial_attention(x, weight, bias))
    y_ref = jax.block_until_ready(reference_forward(x, weight, bias))
    np.testing.assert_allclose(np.asarray(y), np.asarray(y_ref),
                               rtol=1e-5, atol=1e-5)
    print("KERNEL_OK")
</pallas_src>

<mosaic_0001>
module attributes {stable_mosaic.version = 11 : i64} {
  func.func @probe(%arg0: memref<8x128xf32, #tpu.memory_space<vmem>>, %arg1: memref<8x128xf32, #tpu.memory_space<vmem>>) attributes {dimension_semantics = [], scalar_prefetch = 0 : i64, scratch_operands = 0 : i64, tpu.core_type = #tpu.core_type<tc>} {
    %c0 = arith.constant 0 : index
    %c0_0 = arith.constant 0 : index
    %0 = vector.load %arg0[%c0, %c0_0] : memref<8x128xf32, #tpu.memory_space<vmem>>, vector<8x128xf32>
    %c1_i32 = arith.constant 1 : i32
    %1 = tpu.dynamic_rotate %0 by %c1_i32 dim 1 : vector<8x128xf32>, i32 -> vector<8x128xf32>
    %c0_1 = arith.constant 0 : index
    %c0_2 = arith.constant 0 : index
    %2 = vector.load %arg1[%c0_1, %c0_2] : memref<8x128xf32, #tpu.memory_space<vmem>>, vector<8x128xf32>
    tpu.vector_store %arg1[%c0_1, %c0_2], %1 {strides = array<i32>} : memref<8x128xf32, #tpu.memory_space<vmem>>, vector<8x128xf32>,
    return
  }
}

</mosaic_0001>

<llo_original>
// kernel: tpu_custom_call.1
$region0: #{tpu_custom_call.1}
  #allocation0 [shape = 'u32[]', space=smem, size = 0x4, offset = 0x4, fixed_abs, tag = 'smem constant byte address 0x4 - core index']
  #allocation1 [shape = 'u32[144,128]{1,0:T(1,128)}', space=vmem, size = 0x12000, scoped, tag = 'internal scratch']
  %s0 = inlined_call_operand.hbm [shape: f32[8,128], index: 0, kind: input, shape index: {}]
  %s1 = inlined_call_operand.hbm [shape: f32[8,128], index: 1, kind: output, shape index: {}]
  %s2 = sld [smem:[#allocation0]]
  $region18: #{tpu_custom_call.1} parent=0
    _
  %s4 = ssub.s32 1, %s2
  %s5 = scalar_select 0, %s4, %s2
  $region1: #{tpu_custom_call.1} parent=0
    #allocation2 [shape = 'u8[4096]{0}', space=vmem, size = 0x1000, scoped, tag = 'input window, operand 0, single buffered']
    #allocation3 [shape = 's32[1]{0}', space=sflag, size = 0x4, scoped, tag = 'scoped memory for tpu_custom_call.1']
    #allocation4 [shape = 's32[1]{0}', space=sflag, size = 0x4, scoped, tag = 'scoped memory for tpu_custom_call.1']
    #allocation5 [shape = 'u8[4096]{0}', space=vmem, size = 0x1000, scoped, tag = 'output window, operand 0, single buffered']
    %6 = vsyncpa [#allocation3], 0
    %7 = vsyncpa [#allocation4], 0
    // Predicated region
    $region2: #{tpu_custom_call.1} parent=1 // pred_check
      _
    $region3: #{tpu_custom_call.1} parent=1 // pred_check_branch
      %9 = sbr.rel (0) target = $region5
    $region4: #{tpu_custom_call.1} parent=1 // pred_region
      %s11 = ssub.s32 128, 128
      %12 = vsyncadd [#allocation3], %s11
      %s14 = sshll.u32 [#allocation2], 4
      %s15 = int_to_ptr.vmem [resolvable:$true] %s14
      %17 = dma.hbm_to_vmem [thread:$0]  %s0, 128, %s15, [#allocation3]
    $region5: #{tpu_custom_call.1} parent=1 // pred_fallthru
      _
    // Predicated region
    $region6: #{tpu_custom_call.1} parent=1 // pred_check
      _
    $region7: #{tpu_custom_call.1} parent=1 // pred_check_branch
      %19 = sbr.rel (0) target = $region9
    $region8: #{tpu_custom_call.1} parent=1 // pred_region
      %20 = dma.done [#allocation3], 128
    $region9: #{tpu_custom_call.1} parent=1 // pred_fallthru
      _
    %v21 = vld [vmem:[#allocation2] sm:$0xff]
    %22 = vrot.lane.b32.xlu0 %v21, 1
    %v23 = vpop.permute.xlu0 %22
    %24 = vst [vmem:[#allocation5] sm:$0xff] %v23
    // Predicated region
    $region10: #{tpu_custom_call.1} parent=1 // pred_check
      _
    $region11: #{tpu_custom_call.1} parent=1 // pred_check_branch
      %26 = sbr.rel (0) target = $region13
    $region12: #{tpu_custom_call.1} parent=1 // pred_region
      %s28 = ssub.s32 128, 128
      %29 = vsyncadd [#allocation4], %s28
      %s31 = sshll.u32 [#allocation5], 4
      %s32 = int_to_ptr.vmem [resolvable:$true] %s31
      %34 = dma.vmem_to_hbm [thread:$0]  %s32, 128, %s1, [#allocation4]
    $region13: #{tpu_custom_call.1} parent=1 // pred_fallthru
      _
    // Predicated region
    $region14: #{tpu_custom_call.1} parent=1 // pred_check
      _
    $region15: #{tpu_custom_call.1} parent=1 // pred_check_branch
      %36 = sbr.rel (0) target = $region17
    $region16: #{tpu_custom_call.1} parent=1 // pred_region
      %37 = dma.done [#allocation4], 128
    $region17: #{tpu_custom_call.1} parent=1 // pred_fallthru
      _
    %38 = vsyncpa [#allocation3], 1
    %39 = vsyncpa [#allocation4], 1

</llo_original>
